<compile_context>
chip_gen: v7x
topology: tpu7x:2x2x1
jax: 0.10.0
libtpu: 0.0.40
codegen_flags: <defaults>
</compile_context>

<pallas_src>
import functools

import jax
import jax.numpy as jnp
from jax.experimental import pallas as pl
from jax.experimental.pallas import tpu as pltpu

LANE = 128                       # feature / node padding granularity
COMPUTE_DTYPE = jnp.bfloat16     # MXU input dtype; accumulation stays f32
SMALL_N_MAX = 1024               # padded node count handled by the fused path
VMEM_LIMIT = 32 * 1024 * 1024    # valid on v5e (raises 16MiB default) & v6e/v7x


def _round_up(x, m):
    return ((x + m - 1) // m) * m


def _row_tile(n_p):
    # Prefer >= 2 row tiles (v7x megacore) while keeping tiles reasonably big.
    if n_p >= 512 and n_p % 256 == 0:
        return 256
    return 128 if n_p >= 256 else n_p


def _k_tile(n_p):
    for c in (2048, 1024, 512, 256, 128):
        if c <= n_p and n_p % c == 0:
            return c
    return n_p


# --------------------------------- kernels --------------------------------- #

def _fused_forward_kernel(*refs, n_weights):
    """Whole forward in VMEM: relu(X@W0), then relu(scale*(A_unit@(h@Wi)))."""
    x_ref, adj_ref, scale_ref = refs[0], refs[1], refs[2]
    w_refs = refs[3:3 + n_weights]
    o_ref = refs[3 + n_weights]

    h = jnp.maximum(
        jnp.dot(x_ref[...], w_refs[0][...], preferred_element_type=jnp.float32),
        0.0)
    adj = adj_ref[...]
    scale = scale_ref[...]
    for w_ref in w_refs[1:]:
        xw = jnp.dot(h.astype(w_ref.dtype), w_ref[...],
                     preferred_element_type=jnp.float32)
        acc = jnp.dot(adj, xw.astype(adj.dtype),
                      preferred_element_type=jnp.float32)
        h = jnp.maximum(acc * scale, 0.0)
    o_ref[...] = h.astype(o_ref.dtype)


def _dense_kernel(x_ref, w0_ref, o_ref):
    h = jnp.maximum(
        jnp.dot(x_ref[...], w0_ref[...], preferred_element_type=jnp.float32),
        0.0)
    o_ref[...] = h.astype(o_ref.dtype)


def _dense_xw_kernel(x_ref, w0_ref, w1_ref, o_ref):
    # Dense layer fused with the first GCN layer's X @ W: relu(X@W0) @ W1.
    h = jnp.maximum(
        jnp.dot(x_ref[...], w0_ref[...], preferred_element_type=jnp.float32),
        0.0)
    o_ref[...] = jnp.dot(h.astype(w1_ref.dtype), w1_ref[...],
                         preferred_element_type=jnp.float32).astype(o_ref.dtype)


def _spmm_body(adj_ref, xw_ref, acc_ref, *, tile_k, xw_resident):
    k = pl.program_id(1)

    @pl.when(k == 0)
    def _():
        acc_ref[...] = jnp.zeros_like(acc_ref)

    if xw_resident:
        start = pl.multiple_of(k * tile_k, tile_k)
        xw_blk = xw_ref[pl.ds(start, tile_k), :]
    else:
        xw_blk = xw_ref[...]
    acc_ref[...] += jnp.dot(adj_ref[...], xw_blk,
                            preferred_element_type=jnp.float32)


def _spmm_last_kernel(adj_ref, xw_ref, scale_ref, o_ref, acc_ref, *,
                      tile_k, xw_resident):
    """o = relu(row_scale * (A_unit @ xw)), f32 output (final layer)."""
    _spmm_body(adj_ref, xw_ref, acc_ref, tile_k=tile_k, xw_resident=xw_resident)

    @pl.when(pl.program_id(1) == pl.num_programs(1) - 1)
    def _():
        o_ref[...] = jnp.maximum(acc_ref[...] * scale_ref[...],
                                 0.0).astype(o_ref.dtype)


def _spmm_fused_kernel(adj_ref, xw_ref, scale_ref, wnext_ref, o_ref, acc_ref, *,
                       tile_k, xw_resident):
    """o = relu(row_scale * (A_unit @ xw)) @ W_next  (next layer's xw)."""
    _spmm_body(adj_ref, xw_ref, acc_ref, tile_k=tile_k, xw_resident=xw_resident)

    @pl.when(pl.program_id(1) == pl.num_programs(1) - 1)
    def _():
        h = jnp.maximum(acc_ref[...] * scale_ref[...], 0.0)
        o_ref[...] = jnp.dot(h.astype(wnext_ref.dtype), wnext_ref[...],
                             preferred_element_type=jnp.float32
                             ).astype(o_ref.dtype)


# --------------------------------- wrappers --------------------------------- #

def _fused_small_call(x_p, adj_u, scale, w_ps, out_dim_p):
    n_p = x_p.shape[0]
    n_w = len(w_ps)
    in_specs = [
        pl.BlockSpec(x_p.shape, lambda i: (0, 0)),
        pl.BlockSpec(adj_u.shape, lambda i: (0, 0)),
        pl.BlockSpec(scale.shape, lambda i: (0, 0)),
    ] + [pl.BlockSpec(w.shape, lambda i: (0, 0)) for w in w_ps]

    flops = 2 * n_p * x_p.shape[1] * w_ps[0].shape[1]
    for w in w_ps[1:]:
        flops += 2 * n_p * w.shape[0] * w.shape[1] + 2 * n_p * n_p * w.shape[1]
    bytes_acc = ((x_p.size + adj_u.size + sum(w.size for w in w_ps)) * 2
                 + scale.size * 4 + n_p * out_dim_p * 4)

    return pl.pallas_call(
        functools.partial(_fused_forward_kernel, n_weights=n_w),
        out_shape=jax.ShapeDtypeStruct((n_p, out_dim_p), jnp.float32),
        grid=(1,),
        in_specs=in_specs,
        out_specs=pl.BlockSpec((n_p, out_dim_p), lambda i: (0, 0)),
        compiler_params=pltpu.CompilerParams(
            dimension_semantics=("arbitrary",),
            vmem_limit_bytes=VMEM_LIMIT),
        cost_estimate=pl.CostEstimate(flops=int(flops), transcendentals=0,
                                      bytes_accessed=int(bytes_acc)),
    )(x_p, adj_u, scale, *w_ps)


def _dense_call(x_p, w_list, out_dtype):
    """Row-tiled relu(X@W0), optionally fused with @W1 (first GCN's xw)."""
    n_p, d0 = x_p.shape
    d_out = w_list[-1].shape[1]
    tile_m = _row_tile(n_p)

    flops = 2 * n_p * d0 * w_list[0].shape[1]
    if len(w_list) == 2:
        flops += 2 * n_p * w_list[0].shape[1] * d_out
        kernel = _dense_xw_kernel
    else:
        kernel = _dense_kernel
    bytes_acc = (x_p.size * 2 + sum(w.size for w in w_list) * 2
                 + n_p * d_out * jnp.dtype(out_dtype).itemsize)

    in_specs = [pl.BlockSpec((tile_m, d0), lambda i: (i, 0))]
    in_specs += [pl.BlockSpec(w.shape, lambda i: (0, 0)) for w in w_list]

    return pl.pallas_call(
        kernel,
        out_shape=jax.ShapeDtypeStruct((n_p, d_out), out_dtype),
        grid=(n_p // tile_m,),
        in_specs=in_specs,
        out_specs=pl.BlockSpec((tile_m, d_out), lambda i: (i, 0)),
        compiler_params=pltpu.CompilerParams(
            dimension_semantics=("parallel",),
            vmem_limit_bytes=VMEM_LIMIT),
        cost_estimate=pl.CostEstimate(flops=int(flops), transcendentals=0,
                                      bytes_accessed=int(bytes_acc)),
    )(x_p, *w_list)


def _spmm_call(adj_u, xw, scale, w_next, out_dtype):
    """relu(row_scale * (A_unit @ xw)) [@ W_next], tiled over (rows, k)."""
    n_p = adj_u.shape[0]
    dout = xw.shape[1]
    d_res = w_next.shape[1] if w_next is not None else dout
    tile_m = _row_tile(n_p)
    tile_k = _k_tile(n_p)
    n_k = n_p // tile_k

    # Keep xw fully VMEM-resident when it (double-buffered) fits comfortably;
    # otherwise stream (tile_k, dout) panels along k.
    xw_resident = (xw.size * 2 * 2) <= (12 * 1024 * 1024)
    if xw_resident:
        xw_spec = pl.BlockSpec((n_p, dout), lambda i, k: (0, 0))
    else:
        xw_spec = pl.BlockSpec((tile_k, dout), lambda i, k: (k, 0))

    in_specs = [
        pl.BlockSpec((tile_m, tile_k), lambda i, k: (i, k)),
        xw_spec,
        pl.BlockSpec((tile_m, 1), lambda i, k: (i, 0)),
    ]
    args = [adj_u, xw, scale]
    if w_next is not None:
        in_specs.append(pl.BlockSpec(w_next.shape, lambda i, k: (0, 0)))
        args.append(w_next)
        kernel = functools.partial(_spmm_fused_kernel, tile_k=tile_k,
                                   xw_resident=xw_resident)
    else:
        kernel = functools.partial(_spmm_last_kernel, tile_k=tile_k,
                                   xw_resident=xw_resident)

    flops = 2 * n_p * n_p * dout
    if w_next is not None:
        flops += 2 * n_p * dout * d_res
    xw_reads = 1 if xw_resident else (n_p // tile_m)
    bytes_acc = (adj_u.size * 2 + xw.size * 2 * xw_reads + scale.size * 4
                 + n_p * d_res * jnp.dtype(out_dtype).itemsize
                 + (w_next.size * 2 if w_next is not None else 0))

    return pl.pallas_call(
        kernel,
        out_shape=jax.ShapeDtypeStruct((n_p, d_res), out_dtype),
        grid=(n_p // tile_m, n_k),
        in_specs=in_specs,
        out_specs=pl.BlockSpec((tile_m, d_res), lambda i, k: (i, 0)),
        scratch_shapes=[pltpu.VMEM((tile_m, dout), jnp.float32)],
        compiler_params=pltpu.CompilerParams(
            dimension_semantics=("parallel", "arbitrary"),
            vmem_limit_bytes=VMEM_LIMIT),
        cost_estimate=pl.CostEstimate(flops=int(flops), transcendentals=0,
                                      bytes_accessed=int(bytes_acc)),
    )(*args)


def test_forward(adj, node_feats, weights, *, small_path_max=SMALL_N_MAX):
    """Reproduces Test.forward: Dense (relu, no bias) then GCN layers.

    weights[0] is the Dense weight [D0, D1]; weights[1:] are GCN weights.
    """
    n, d0 = node_feats.shape
    n_p = _round_up(n, LANE)

    dims = [d0] + [w.shape[1] for w in weights]
    dims_p = [_round_up(d, LANE) for d in dims]

    # Factor A = diag(row_scale) @ A_unit with |A_unit| <= 1 so the bf16 MXU
    # operand is exact/near-exact (exact 0/1 for row-normalized adjacencies)
    # and the f32 row scale is applied after f32 accumulation.
    adj = adj.astype(jnp.float32)
    row_max = jnp.max(jnp.abs(adj), axis=1, keepdims=True)
    safe = jnp.where(row_max > 0.0, row_max, 1.0)
    adj_unit = (adj / safe).astype(COMPUTE_DTYPE)

    adj_u = jnp.zeros((n_p, n_p), COMPUTE_DTYPE).at[:n, :n].set(adj_unit)
    scale = jnp.ones((n_p, 1), jnp.float32).at[:n, :].set(safe)

    x_p = jnp.zeros((n_p, dims_p[0]), COMPUTE_DTYPE)
    x_p = x_p.at[:n, :d0].set(node_feats.astype(COMPUTE_DTYPE))

    w_ps = []
    for li, w in enumerate(weights):
        wp = jnp.zeros((dims_p[li], dims_p[li + 1]), COMPUTE_DTYPE)
        wp = wp.at[:w.shape[0], :w.shape[1]].set(w.astype(COMPUTE_DTYPE))
        w_ps.append(wp)

    if n_p <= small_path_max:
        # Single fully fused kernel, everything VMEM resident.
        h = _fused_small_call(x_p, adj_u, scale, w_ps, dims_p[-1])
    elif len(w_ps) == 1:
        h = _dense_call(x_p, w_ps[:1], out_dtype=jnp.float32)
    else:
        # Dense fused with the first GCN layer's X @ W1.
        xw = _dense_call(x_p, w_ps[:2], out_dtype=COMPUTE_DTYPE)
        h = None
        for gi in range(1, len(w_ps)):
            last = gi == len(w_ps) - 1
            if last:
                h = _spmm_call(adj_u, xw, scale, None, out_dtype=jnp.float32)
            else:
                # spmm of layer gi fused with layer gi+1's X @ W.
                xw = _spmm_call(adj_u, xw, scale, w_ps[gi + 1],
                                out_dtype=COMPUTE_DTYPE)

    return h[:n, :dims[-1]]


# ------------------------------- demo / init -------------------------------- #

if __name__ == "__main__":
    def glorot(key, shape):
        fan_in, fan_out = shape
        limit = jnp.sqrt(6.0 / (fan_in + fan_out))
        return jax.random.uniform(key, shape, jnp.float32, -limit, limit)

    def make_case(key, num_nodes, layers_dims):
        k_feat, k_adj, *k_w = jax.random.split(key, 2 + len(layers_dims) - 1)
        node_feats = jax.random.normal(k_feat, (num_nodes, layers_dims[0]),
                                       dtype=jnp.float32)
        # Symmetric, self-looped, row-normalized adjacency (dense stand-in for
        # the sparse sp_adj_list).
        a = (jax.random.uniform(k_adj, (num_nodes, num_nodes)) > 0.5
             ).astype(jnp.float32)
        a = jnp.maximum(a, a.T) + jnp.eye(num_nodes, dtype=jnp.float32)
        adj = a / jnp.sum(a, axis=1, keepdims=True)
        weights = [glorot(k_w[i], (layers_dims[i], layers_dims[i + 1]))
                   for i in range(len(layers_dims) - 1)]
        return adj, node_feats, weights

    def reference(adj, node_feats, weights):
        h = jnp.maximum(node_feats @ weights[0], 0.0)
        for w in weights[1:]:
            h = jnp.maximum(adj @ (h @ w), 0.0)
        return h

    key = jax.random.PRNGKey(0)
    k1, k2 = jax.random.split(key)

    # Case 1: small graph -> single fully fused VMEM-resident kernel.
    adj, feats, weights = make_case(k1, 8, [16, 32, 32, 16])
    out = jax.block_until_ready(test_forward(adj, feats, weights))
    ref = reference(adj, feats, weights)
    assert out.shape == ref.shape, (out.shape, ref.shape)
    assert jnp.all(jnp.isfinite(out))
    assert jnp.allclose(out, ref, atol=5e-2, rtol=5e-2), \
        float(jnp.max(jnp.abs(out - ref)))

    # Case 2: force the tiled path (multi row tiles + k accumulation + fused
    # next-layer X@W at the spmm finalize).
    adj2, feats2, weights2 = make_case(k2, 300, [16, 64, 64, 32])
    out2 = jax.block_until_ready(
        test_forward(adj2, feats2, weights2, small_path_max=0))
    ref2 = reference(adj2, feats2, weights2)
    assert out2.shape == ref2.shape, (out2.shape, ref2.shape)
    assert jnp.all(jnp.isfinite(out2))
    assert jnp.allclose(out2, ref2, atol=5e-2, rtol=5e-2), \
        float(jnp.max(jnp.abs(out2 - ref2)))

    print("KERNEL_OK")
</pallas_src>

<mosaic_0001>
module attributes {stable_mosaic.version = 11 : i64} {
  func.func @_fused_forward_kernel(%arg0: i32, %arg1: memref<128x128xbf16, #tpu.memory_space<vmem>>, %arg2: memref<128x128xbf16, #tpu.memory_space<vmem>>, %arg3: memref<128x1xf32, #tpu.memory_space<vmem>>, %arg4: memref<128x128xbf16, #tpu.memory_space<vmem>>, %arg5: memref<128x128xbf16, #tpu.memory_space<vmem>>, %arg6: memref<128x128xbf16, #tpu.memory_space<vmem>>, %arg7: memref<128x128xf32, #tpu.memory_space<vmem>>) attributes {dimension_semantics = [#tpu.dimension_semantics<arbitrary>], iteration_bounds = array<i64: 1>, scalar_prefetch = 0 : i64, scratch_operands = 0 : i64, tpu.core_type = #tpu.core_type<tc>, window_params = [{pipeline_mode = #tpu.pipeline_mode<synchronous>, transform_indices = @transform_0, window_bounds = array<i64: 128, 128>}, {pipeline_mode = #tpu.pipeline_mode<synchronous>, transform_indices = @transform_1, window_bounds = array<i64: 128, 128>}, {pipeline_mode = #tpu.pipeline_mode<synchronous>, transform_indices = @transform_2, window_bounds = array<i64: 128, 1>}, {pipeline_mode = #tpu.pipeline_mode<synchronous>, transform_indices = @transform_3, window_bounds = array<i64: 128, 128>}, {pipeline_mode = #tpu.pipeline_mode<synchronous>, transform_indices = @transform_4, window_bounds = array<i64: 128, 128>}, {pipeline_mode = #tpu.pipeline_mode<synchronous>, transform_indices = @transform_5, window_bounds = array<i64: 128, 128>}, {pipeline_mode = #tpu.pipeline_mode<synchronous>, transform_indices = @transform_6, window_bounds = array<i64: 128, 128>}]} {
    %c0 = arith.constant 0 : index
    %c0_0 = arith.constant 0 : index
    %0 = vector.load %arg1[%c0, %c0_0] : memref<128x128xbf16, #tpu.memory_space<vmem>>, vector<128x128xbf16>
    %c0_1 = arith.constant 0 : index
    %c0_2 = arith.constant 0 : index
    %1 = vector.load %arg4[%c0_1, %c0_2] : memref<128x128xbf16, #tpu.memory_space<vmem>>, vector<128x128xbf16>
    %cst = arith.constant dense<0.000000e+00> : vector<128x128xf32>
    %2 = tpu.matmul %0, %1, %cst {dimension_numbers = #tpu.dot_dimension_numbers<[1], [0], [0], [1], [0, 0, 1, 1], [], []>} : vector<128x128xbf16>, vector<128x128xbf16>, vector<128x128xf32> -> vector<128x128xf32>
    %cst_3 = arith.constant 0.000000e+00 : f32
    %3 = vector.broadcast %cst_3 : f32 to vector<128x128xf32>
    %4 = arith.maximumf %2, %3 : vector<128x128xf32>
    %c0_4 = arith.constant 0 : index
    %c0_5 = arith.constant 0 : index
    %5 = vector.load %arg2[%c0_4, %c0_5] : memref<128x128xbf16, #tpu.memory_space<vmem>>, vector<128x128xbf16>
    %c0_6 = arith.constant 0 : index
    %c0_7 = arith.constant 0 : index
    %6 = vector.load %arg3[%c0_6, %c0_7] : memref<128x1xf32, #tpu.memory_space<vmem>>, vector<128x1xf32>
    %7 = arith.truncf %4 : vector<128x128xf32> to vector<128x128xbf16>
    %c0_8 = arith.constant 0 : index
    %c0_9 = arith.constant 0 : index
    %8 = vector.load %arg5[%c0_8, %c0_9] : memref<128x128xbf16, #tpu.memory_space<vmem>>, vector<128x128xbf16>
    %cst_10 = arith.constant dense<0.000000e+00> : vector<128x128xf32>
    %9 = tpu.matmul %7, %8, %cst_10 {dimension_numbers = #tpu.dot_dimension_numbers<[1], [0], [0], [1], [0, 0, 1, 1], [], []>} : vector<128x128xbf16>, vector<128x128xbf16>, vector<128x128xf32> -> vector<128x128xf32>
    %10 = arith.truncf %9 : vector<128x128xf32> to vector<128x128xbf16>
    %cst_11 = arith.constant dense<0.000000e+00> : vector<128x128xf32>
    %11 = tpu.matmul %5, %10, %cst_11 {dimension_numbers = #tpu.dot_dimension_numbers<[1], [0], [0], [1], [0, 0, 1, 1], [], []>} : vector<128x128xbf16>, vector<128x128xbf16>, vector<128x128xf32> -> vector<128x128xf32>
    %12 = vector.broadcast %6 : vector<128x1xf32> to vector<128x128xf32>
    %13 = arith.mulf %11, %12 : vector<128x128xf32>
    %cst_12 = arith.constant 0.000000e+00 : f32
    %14 = vector.broadcast %cst_12 : f32 to vector<128x128xf32>
    %15 = arith.maximumf %13, %14 : vector<128x128xf32>
    %16 = arith.truncf %15 : vector<128x128xf32> to vector<128x128xbf16>
    %c0_13 = arith.constant 0 : index
    %c0_14 = arith.constant 0 : index
    %17 = vector.load %arg6[%c0_13, %c0_14] : memref<128x128xbf16, #tpu.memory_space<vmem>>, vector<128x128xbf16>
    %cst_15 = arith.constant dense<0.000000e+00> : vector<128x128xf32>
    %18 = tpu.matmul %16, %17, %cst_15 {dimension_numbers = #tpu.dot_dimension_numbers<[1], [0], [0], [1], [0, 0, 1, 1], [], []>} : vector<128x128xbf16>, vector<128x128xbf16>, vector<128x128xf32> -> vector<128x128xf32>
    %19 = arith.truncf %18 : vector<128x128xf32> to vector<128x128xbf16>
    %cst_16 = arith.constant dense<0.000000e+00> : vector<128x128xf32>
    %20 = tpu.matmul %5, %19, %cst_16 {dimension_numbers = #tpu.dot_dimension_numbers<[1], [0], [0], [1], [0, 0, 1, 1], [], []>} : vector<128x128xbf16>, vector<128x128xbf16>, vector<128x128xf32> -> vector<128x128xf32>
    %21 = vector.broadcast %6 : vector<128x1xf32> to vector<128x128xf32>
    %22 = arith.mulf %20, %21 : vector<128x128xf32>
    %cst_17 = arith.constant 0.000000e+00 : f32
    %23 = vector.broadcast %cst_17 : f32 to vector<128x128xf32>
    %24 = arith.maximumf %22, %23 : vector<128x128xf32>
    %c0_18 = arith.constant 0 : index
    %c0_19 = arith.constant 0 : index
    %25 = vector.load %arg7[%c0_18, %c0_19] : memref<128x128xf32, #tpu.memory_space<vmem>>, vector<128x128xf32>
    tpu.vector_store %arg7[%c0_18, %c0_19], %24 {strides = array<i32>} : memref<128x128xf32, #tpu.memory_space<vmem>>, vector<128x128xf32>,
    return
  }
  func.func @transform_0(%arg0: i32) -> (i32, i32) {
    %c0_i32 = arith.constant 0 : i32
    %c0_i32_0 = arith.constant 0 : i32
    %c0_i32_1 = arith.constant 0 : i32
    return %c0_i32, %c0_i32_0 : i32, i32
  }
  func.func @transform_1(%arg0: i32) -> (i32, i32) {
    %c0_i32 = arith.constant 0 : i32
    %c0_i32_0 = arith.constant 0 : i32
    %c0_i32_1 = arith.constant 0 : i32
    return %c0_i32, %c0_i32_0 : i32, i32
  }
  func.func @transform_2(%arg0: i32) -> (i32, i32) {
    %c0_i32 = arith.constant 0 : i32
    %c0_i32_0 = arith.constant 0 : i32
    %c0_i32_1 = arith.constant 0 : i32
    return %c0_i32, %c0_i32_0 : i32, i32
  }
  func.func @transform_3(%arg0: i32) -> (i32, i32) {
    %c0_i32 = arith.constant 0 : i32
    %c0_i32_0 = arith.constant 0 : i32
    %c0_i32_1 = arith.constant 0 : i32
    return %c0_i32, %c0_i32_0 : i32, i32
  }
  func.func @transform_4(%arg0: i32) -> (i32, i32) {
    %c0_i32 = arith.constant 0 : i32
    %c0_i32_0 = arith.constant 0 : i32
    %c0_i32_1 = arith.constant 0 : i32
    return %c0_i32, %c0_i32_0 : i32, i32
  }
  func.func @transform_5(%arg0: i32) -> (i32, i32) {
    %c0_i32 = arith.constant 0 : i32
    %c0_i32_0 = arith.constant 0 : i32
    %c0_i32_1 = arith.constant 0 : i32
    return %c0_i32, %c0_i32_0 : i32, i32
  }
  func.func @transform_6(%arg0: i32) -> (i32, i32) {
    %c0_i32 = arith.constant 0 : i32
    %c0_i32_0 = arith.constant 0 : i32
    %c0_i32_1 = arith.constant 0 : i32
    return %c0_i32, %c0_i32_0 : i32, i32
  }
}

</mosaic_0001>

<llo_original>
// kernel: tpu_custom_call.1
$region0: #{tpu_custom_call.1}
  #allocation0 [shape = 'u32[]', space=smem, size = 0x4, offset = 0x4, fixed_abs, tag = 'smem constant byte address 0x4 - core index']
  #allocation1 [shape = 'u32[144,128]{1,0:T(1,128)}', space=vmem, size = 0x12000, scoped, tag = 'internal scratch']
  %s0 = inlined_call_operand.vmem [shape: bf16[128,128], index: 0, kind: input, shape index: {}]
  %s1 = inlined_call_operand.vmem [shape: bf16[128,128], index: 1, kind: input, shape index: {}]
  %s2 = inlined_call_operand.vmem [shape: f32[128,1], index: 2, kind: input, shape index: {}]
  %s3 = inlined_call_operand.hbm [shape: bf16[128,128], index: 3, kind: input, shape index: {}]
  %s4 = inlined_call_operand.hbm [shape: bf16[128,128], index: 4, kind: input, shape index: {}]
  %s5 = inlined_call_operand.hbm [shape: bf16[128,128], index: 5, kind: input, shape index: {}]
  %s6 = inlined_call_operand.hbm [shape: f32[128,128], index: 6, kind: output, shape index: {}]
  %s7 = sld [smem:[#allocation0]]
  $region46: #{tpu_custom_call.1} parent=0
    _
  %s9 = ssub.s32 1, %s7
  %s10 = scalar_select 0, %s9, %s7
  $region1: #{tpu_custom_call.1} parent=0
    #allocation2 [shape = 'u8[32768]{0}', space=vmem, size = 0x8000, scoped, tag = 'input window, operand 3, single buffered']
    #allocation3 [shape = 's32[1]{0}', space=sflag, size = 0x4, scoped, tag = 'scoped memory for tpu_custom_call.1']
    #allocation4 [shape = 's32[1]{0}', space=sflag, size = 0x4, scoped, tag = 'scoped memory for tpu_custom_call.1']
    #allocation5 [shape = 'u8[32768]{0}', space=vmem, size = 0x8000, scoped, tag = 'input window, operand 4, single buffered']
    #allocation6 [shape = 's32[1]{0}', space=sflag, size = 0x4, scoped, tag = 'scoped memory for tpu_custom_call.1']
    #allocation7 [shape = 'u8[32768]{0}', space=vmem, size = 0x8000, scoped, tag = 'input window, operand 5, single buffered']
    #allocation8 [shape = 'u8[65536]{0}', space=vmem, size = 0x10000, scoped, tag = 'output window, operand 0, single buffered']
    %11 = vsyncpa [#allocation3], 0
    %12 = vsyncpa [#allocation6], 0
    %13 = vsyncpa [#allocation4], 0
    // Predicated region
    $region2: #{tpu_custom_call.1} parent=1 // pred_check
      _
    $region3: #{tpu_custom_call.1} parent=1 // pred_check_branch
      %15 = sbr.rel (0) target = $region5
    $region4: #{tpu_custom_call.1} parent=1 // pred_region
      _
    $region5: #{tpu_custom_call.1} parent=1 // pred_fallthru
      _
    // Predicated region
    $region6: #{tpu_custom_call.1} parent=1 // pred_check
      _
    $region7: #{tpu_custom_call.1} parent=1 // pred_check_branch
      %17 = sbr.rel (0) target = $region9
    $region8: #{tpu_custom_call.1} parent=1 // pred_region
      _
    $region9: #{tpu_custom_call.1} parent=1 // pred_fallthru
      _
    // Predicated region
    $region10: #{tpu_custom_call.1} parent=1 // pred_check
      _
    $region11: #{tpu_custom_call.1} parent=1 // pred_check_branch
      %19 = sbr.rel (0) target = $region13
    $region12: #{tpu_custom_call.1} parent=1 // pred_region
      _
    $region13: #{tpu_custom_call.1} parent=1 // pred_fallthru
      _
    // Predicated region
    $region14: #{tpu_custom_call.1} parent=1 // pred_check
      _
    $region15: #{tpu_custom_call.1} parent=1 // pred_check_branch
      %21 = sbr.rel (0) target = $region17
    $region16: #{tpu_custom_call.1} parent=1 // pred_region
      %s23 = ssub.s32 1024, 1024
      %24 = vsyncadd [#allocation3], %s23
      %s25 = sshll.u32 [#allocation2], 4
      %s26 = int_to_ptr.vmem [resolvable:$true] %s25
      %31 = dma.hbm_to_vmem [thread:$0]  %s3, 1024, %s26, [#allocation3], 64, 64, 4
    $region17: #{tpu_custom_call.1} parent=1 // pred_fallthru
      _
    // Predicated region
    $region18: #{tpu_custom_call.1} parent=1 // pred_check
      _
    $region19: #{tpu_custom_call.1} parent=1 // pred_check_branch
      %33 = sbr.rel (0) target = $region21
    $region20: #{tpu_custom_call.1} parent=1 // pred_region
      %s35 = ssub.s32 1024, 1024
      %36 = vsyncadd [#allocation6], %s35
      %s37 = sshll.u32 [#allocation5], 4
      %s38 = int_to_ptr.vmem [resolvable:$true] %s37
      %43 = dma.hbm_to_vmem [thread:$0]  %s4, 1024, %s38, [#allocation6], 64, 64, 4
    $region21: #{tpu_custom_call.1} parent=1 // pred_fallthru
      _
    // Predicated region
    $region22: #{tpu_custom_call.1} parent=1 // pred_check
      _
    $region23: #{tpu_custom_call.1} parent=1 // pred_check_branch
      %45 = sbr.rel (0) target = $region25
    $region24: #{tpu_custom_call.1} parent=1 // pred_region
      %s47 = ssub.s32 1024, 1024
      %48 = vsyncadd [#allocation6], %s47
      %s49 = sshll.u32 [#allocation7], 4
      %s50 = int_to_ptr.vmem [resolvable:$true] %s49
      %55 = dma.hbm_to_vmem [thread:$0]  %s5, 1024, %s50, [#allocation6], 64, 64, 4
    $region25: #{tpu_custom_call.1} parent=1 // pred_fallthru
      _
    // Predicated region
    $region26: #{tpu_custom_call.1} parent=1 // pred_check
      _
    $region27: #{tpu_custom_call.1} parent=1 // pred_check_branch
      %57 = sbr.rel (0) target = $region29
    $region28: #{tpu_custom_call.1} parent=1 // pred_region
      %58 = dma.done [#allocation3], 1024
    $region29: #{tpu_custom_call.1} parent=1 // pred_fallthru
      _
    // Predicated region
    $region30: #{tpu_custom_call.1} parent=1 // pred_check
      _
    $region31: #{tpu_custom_call.1} parent=1 // pred_check_branch
      %60 = sbr.rel (0) target = $region33
    $region32: #{tpu_custom_call.1} parent=1 // pred_region
      %61 = dma.done [#allocation6], 1024
    $region33: #{tpu_custom_call.1} parent=1 // pred_fallthru
      _
    // Predicated region
    $region34: #{tpu_custom_call.1} parent=1 // pred_check
      _
    $region35: #{tpu_custom_call.1} parent=1 // pred_check_branch
      %63 = sbr.rel (0) target = $region37
    $region36: #{tpu_custom_call.1} parent=1 // pred_region
      %64 = dma.done [#allocation6], 1024
    $region37: #{tpu_custom_call.1} parent=1 // pred_fallthru
      _
    %v66 = vld [vmem:[%s0] sm:$0xf]
    %v67 = vld [vmem:[%s0 + $0x4] sm:$0xf]
    %v68 = vld [vmem:[%s0 + $0x8] sm:$0xf]
    %v69 = vld [vmem:[%s0 + $0xc] sm:$0xf]
    %v70 = vld [vmem:[%s0 + $0x10] sm:$0xf]
    %v71 = vld [vmem:[%s0 + $0x14] sm:$0xf]
    %v72 = vld [vmem:[%s0 + $0x18] sm:$0xf]
    %v73 = vld [vmem:[%s0 + $0x1c] sm:$0xf]
    %v74 = vld [vmem:[%s0 + $0x20] sm:$0xf]
    %v75 = vld [vmem:[%s0 + $0x24] sm:$0xf]
    %v76 = vld [vmem:[%s0 + $0x28] sm:$0xf]
    %v77 = vld [vmem:[%s0 + $0x2c] sm:$0xf]
    %v78 = vld [vmem:[%s0 + $0x30] sm:$0xf]
    %v79 = vld [vmem:[%s0 + $0x34] sm:$0xf]
    %v80 = vld [vmem:[%s0 + $0x38] sm:$0xf]
    %v81 = vld [vmem:[%s0 + $0x3c] sm:$0xf]
    %v82 = vld [vmem:[#allocation2] sm:$0xf]
    %v83 = vld [vmem:[#allocation2 + $0x4] sm:$0xf]
    %v84 = vld [vmem:[#allocation2 + $0x8] sm:$0xf]
    %v85 = vld [vmem:[#allocation2 + $0xc] sm:$0xf]
    %v86 = vld [vmem:[#allocation2 + $0x10] sm:$0xf]
    %v87 = vld [vmem:[#allocation2 + $0x14] sm:$0xf]
    %v88 = vld [vmem:[#allocation2 + $0x18] sm:$0xf]
    %v89 = vld [vmem:[#allocation2 + $0x1c] sm:$0xf]
    %v90 = vld [vmem:[#allocation2 + $0x20] sm:$0xf]
    %v91 = vld [vmem:[#allocation2 + $0x24] sm:$0xf]
    %v92 = vld [vmem:[#allocation2 + $0x28] sm:$0xf]
    %v93 = vld [vmem:[#allocation2 + $0x2c] sm:$0xf]
    %v94 = vld [vmem:[#allocation2 + $0x30] sm:$0xf]
    %v95 = vld [vmem:[#allocation2 + $0x34] sm:$0xf]
    %v96 = vld [vmem:[#allocation2 + $0x38] sm:$0xf]
    %v97 = vld [vmem:[#allocation2 + $0x3c] sm:$0xf]
    %v114 = vunpack.c.l.b16 %v66
    %v115 = vunpack.c.l.b16 %v67
    %v116 = vunpack.c.l.b16 %v68
    %v117 = vunpack.c.l.b16 %v69
    %v118 = vunpack.c.l.b16 %v70
    %v119 = vunpack.c.l.b16 %v71
    %v120 = vunpack.c.l.b16 %v72
    %v121 = vunpack.c.l.b16 %v73
    %v122 = vunpack.c.l.b16 %v74
    %v123 = vunpack.c.l.b16 %v75
    %v124 = vunpack.c.l.b16 %v76
    %v125 = vunpack.c.l.b16 %v77
    %v126 = vunpack.c.l.b16 %v78
    %v127 = vunpack.c.l.b16 %v79
    %v128 = vunpack.c.l.b16 %v80
    %v129 = vunpack.c.l.b16 %v81
    %v130 = vpack.c.b16 %v115, %v114
    %v131 = vpack.c.b16 %v117, %v116
    %v132 = vpack.c.b16 %v119, %v118
    %v133 = vpack.c.b16 %v121, %v120
    %v134 = vpack.c.b16 %v123, %v122
    %v135 = vpack.c.b16 %v125, %v124
    %v136 = vpack.c.b16 %v127, %v126
    %v137 = vpack.c.b16 %v129, %v128
    %v162 = vunpack.c.l.b16 %v82
    %v163 = vunpack.c.l.b16 %v83
    %v164 = vunpack.c.l.b16 %v84
    %v165 = vunpack.c.l.b16 %v85
    %v166 = vunpack.c.l.b16 %v86
    %v167 = vunpack.c.l.b16 %v87
    %v168 = vunpack.c.l.b16 %v88
    %v169 = vunpack.c.l.b16 %v89
    %v170 = vunpack.c.l.b16 %v90
    %v171 = vunpack.c.l.b16 %v91
    %v172 = vunpack.c.l.b16 %v92
    %v173 = vunpack.c.l.b16 %v93
    %v174 = vunpack.c.l.b16 %v94
    %v175 = vunpack.c.l.b16 %v95
    %v176 = vunpack.c.l.b16 %v96
    %v177 = vunpack.c.l.b16 %v97
    %v178 = vpack.c.b16 %v163, %v162
    %v179 = vpack.c.b16 %v165, %v164
    %v180 = vpack.c.b16 %v167, %v166
    %v181 = vpack.c.b16 %v169, %v168
    %v182 = vpack.c.b16 %v171, %v170
    %v183 = vpack.c.b16 %v173, %v172
    %v184 = vpack.c.b16 %v175, %v174
    %v185 = vpack.c.b16 %v177, %v176
    %194 = vmatprep.subr.bf16.mxu0 0
    %195 = vmatpush1.bf16.msra.mxu0 %v178
    %196 = vmatprep.subr.bf16.mxu0 0
    %197 = vmatpush1.bf16.msra.mxu0 %v179
    %198 = vmatprep.subr.bf16.mxu0 0
    %199 = vmatpush1.bf16.msra.mxu0 %v180
    %200 = vmatprep.subr.bf16.mxu0 0
    %201 = vmatpush1.bf16.msra.mxu0 %v181
    %202 = vmatprep.subr.bf16.mxu0 0
    %203 = vmatpush1.bf16.msra.mxu0 %v182
    %204 = vmatprep.subr.bf16.mxu0 0
    %205 = vmatpush1.bf16.msra.mxu0 %v183
    %206 = vmatprep.subr.bf16.mxu0 0
    %207 = vmatpush1.bf16.msra.mxu0 %v184
    %208 = vmatprep.subr.bf16.mxu0 0
    %209 = vmatpush1.bf16.msra.mxu0 %v185
    %210 = vmatprep.subr.bf16.mxu0 0
    %211 = vmatpush1.bf16.msra.mxu0 0
    %212 = vmatprep.subr.bf16.mxu0 0
    %213 = vmatpush1.bf16.msra.mxu0 0
    %214 = vmatprep.subr.bf16.mxu0 0
    %215 = vmatpush1.bf16.msra.mxu0 0
    %216 = vmatprep.subr.bf16.mxu0 0
    %217 = vmatpush1.bf16.msra.mxu0 0
    %218 = vmatprep.subr.bf16.mxu0 0
    %219 = vmatpush1.bf16.msra.mxu0 0
    %220 = vmatprep.subr.bf16.mxu0 0
    %221 = vmatpush1.bf16.msra.mxu0 0
    %222 = vmatprep.subr.bf16.mxu0 0
    %223 = vmatpush1.bf16.msra.mxu0 0
    %224 = vmatprep.subr.bf16.mxu0 0
    %225 = vmatpush1.bf16.msra.mxu0 0
    %226 = vmatprep.mubr.bf16.mxu0 0
    %227 = vmatmul.mubr.bf16.gmra.mrb[0].mxu0 %v130
    %v228 = vpop.f32.mrb[0].mxu0
    %v229 = vadd.f32 0.0, %v228
    %v230 = vpop.f32.mrb[0].mxu0
    %v231 = vpop.f32.mrb[0].mxu0
    %v232 = vadd.f32 0.0, %v231
    %v233 = vpop.f32.mrb[0].mxu0
    %234 = vmatprep.mubr.bf16.mxu0 0
    %235 = vmatmul.mubr.bf16.gmra.mrb[0].mxu0 %v131
    %v236 = vpop.f32.mrb[0].mxu0
    %v237 = vadd.f32 0.0, %v236
    %v238 = vpop.f32.mrb[0].mxu0
    %v239 = vpop.f32.mrb[0].mxu0
    %v240 = vadd.f32 0.0, %v239
    %v241 = vpop.f32.mrb[0].mxu0
    %242 = vmatprep.mubr.bf16.mxu0 0
    %243 = vmatmul.mubr.bf16.gmra.mrb[0].mxu0 %v132
    %v244 = vpop.f32.mrb[0].mxu0
    %v245 = vadd.f32 0.0, %v244
    %v246 = vpop.f32.mrb[0].mxu0
    %v247 = vpop.f32.mrb[0].mxu0
    %v248 = vadd.f32 0.0, %v247
    %v249 = vpop.f32.mrb[0].mxu0
    %250 = vmatprep.mubr.bf16.mxu0 0
    %251 = vmatmul.mubr.bf16.gmra.mrb[0].mxu0 %v133
    %v252 = vpop.f32.mrb[0].mxu0
    %v253 = vadd.f32 0.0, %v252
    %v254 = vpop.f32.mrb[0].mxu0
    %v255 = vpop.f32.mrb[0].mxu0
    %v256 = vadd.f32 0.0, %v255
    %v257 = vpop.f32.mrb[0].mxu0
    %258 = vmatprep.mubr.bf16.mxu0 0
    %259 = vmatmul.mubr.bf16.gmra.mrb[0].mxu0 %v134
    %v260 = vpop.f32.mrb[0].mxu0
    %v261 = vadd.f32 0.0, %v260
    %v262 = vpop.f32.mrb[0].mxu0
    %v263 = vpop.f32.mrb[0].mxu0
    %v264 = vadd.f32 0.0, %v263
    %v265 = vpop.f32.mrb[0].mxu0
    %266 = vmatprep.mubr.bf16.mxu0 0
    %267 = vmatmul.mubr.bf16.gmra.mrb[0].mxu0 %v135
    %v268 = vpop.f32.mrb[0].mxu0
    %v269 = vadd.f32 0.0, %v268
    %v270 = vpop.f32.mrb[0].mxu0
    %v271 = vpop.f32.mrb[0].mxu0
    %v272 = vadd.f32 0.0, %v271
    %v273 = vpop.f32.mrb[0].mxu0
    %274 = vmatprep.mubr.bf16.mxu0 0
    %275 = vmatmul.mubr.bf16.gmra.mrb[0].mxu0 %v136
    %v276 = vpop.f32.mrb[0].mxu0
    %v277 = vadd.f32 0.0, %v276
    %v278 = vpop.f32.mrb[0].mxu0
    %v279 = vpop.f32.mrb[0].mxu0
    %v280 = vadd.f32 0.0, %v279
    %v281 = vpop.f32.mrb[0].mxu0
    %282 = vmatprep.mubr.bf16.mxu0 0
    %283 = vmatmul.mubr.bf16.gmra.mrb[0].mxu0 %v137
    %v284 = vpop.f32.mrb[0].mxu0
    %v285 = vadd.f32 0.0, %v284
    %v286 = vpop.f32.mrb[0].mxu0
    %v287 = vpop.f32.mrb[0].mxu0
    %v288 = vadd.f32 0.0, %v287
    %v289 = vpop.f32.mrb[0].mxu0
    %290 = vdwg.mxu0
    %v291 = vmax.f32 %v229, 0.0
    %v292 = vmax.f32 %v232, 0.0
    %v293 = vmax.f32 %v237, 0.0
    %v294 = vmax.f32 %v240, 0.0
    %v295 = vmax.f32 %v245, 0.0
    %v296 = vmax.f32 %v248, 0.0
    %v297 = vmax.f32 %v253, 0.0
    %v298 = vmax.f32 %v256, 0.0
    %v299 = vmax.f32 %v261, 0.0
    %v300 = vmax.f32 %v264, 0.0
    %v301 = vmax.f32 %v269, 0.0
    %v302 = vmax.f32 %v272, 0.0
    %v303 = vmax.f32 %v277, 0.0
    %v304 = vmax.f32 %v280, 0.0
    %v305 = vmax.f32 %v285, 0.0
    %v306 = vmax.f32 %v288, 0.0
    %v307 = vld [vmem:[%s1] sm:$0xf]
    %v308 = vld [vmem:[%s1 + $0x4] sm:$0xf]
    %v309 = vld [vmem:[%s1 + $0x8] sm:$0xf]
    %v310 = vld [vmem:[%s1 + $0xc] sm:$0xf]
    %v311 = vld [vmem:[%s1 + $0x10] sm:$0xf]
    %v312 = vld [vmem:[%s1 + $0x14] sm:$0xf]
    %v313 = vld [vmem:[%s1 + $0x18] sm:$0xf]
    %v314 = vld [vmem:[%s1 + $0x1c] sm:$0xf]
    %v315 = vld [vmem:[%s1 + $0x20] sm:$0xf]
    %v316 = vld [vmem:[%s1 + $0x24] sm:$0xf]
    %v317 = vld [vmem:[%s1 + $0x28] sm:$0xf]
    %v318 = vld [vmem:[%s1 + $0x2c] sm:$0xf]
    %v319 = vld [vmem:[%s1 + $0x30] sm:$0xf]
    %v320 = vld [vmem:[%s1 + $0x34] sm:$0xf]
    %v321 = vld [vmem:[%s1 + $0x38] sm:$0xf]
    %v322 = vld [vmem:[%s1 + $0x3c] sm:$0xf]
    %v323 = vld [vmem:[%s2] sm:$0xff]
    %v324 = vld [vmem:[%s2 + $0x8] sm:$0xff]
    %v325 = vld [vmem:[%s2 + $0x10] sm:$0xff]
    %v326 = vld [vmem:[%s2 + $0x18] sm:$0xff]
    %v327 = vld [vmem:[%s2 + $0x20] sm:$0xff]
    %v328 = vld [vmem:[%s2 + $0x28] sm:$0xff]
    %v329 = vld [vmem:[%s2 + $0x30] sm:$0xff]
    %v330 = vld [vmem:[%s2 + $0x38] sm:$0xff]
    %v331 = vld [vmem:[%s2 + $0x40] sm:$0xff]
    %v332 = vld [vmem:[%s2 + $0x48] sm:$0xff]
    %v333 = vld [vmem:[%s2 + $0x50] sm:$0xff]
    %v334 = vld [vmem:[%s2 + $0x58] sm:$0xff]
    %v335 = vld [vmem:[%s2 + $0x60] sm:$0xff]
    %v336 = vld [vmem:[%s2 + $0x68] sm:$0xff]
    %v337 = vld [vmem:[%s2 + $0x70] sm:$0xff]
    %v338 = vld [vmem:[%s2 + $0x78] sm:$0xff]
    %v339 = vpack.c.bf16 %v292, %v291
    %v340 = vpack.c.bf16 %v294, %v293
    %v341 = vpack.c.bf16 %v296, %v295
    %v342 = vpack.c.bf16 %v298, %v297
    %v343 = vpack.c.bf16 %v300, %v299
    %v344 = vpack.c.bf16 %v302, %v301
    %v345 = vpack.c.bf16 %v304, %v303
    %v346 = vpack.c.bf16 %v306, %v305
    %v347 = vld [vmem:[#allocation5] sm:$0xf]
    %v348 = vld [vmem:[#allocation5 + $0x4] sm:$0xf]
    %v349 = vld [vmem:[#allocation5 + $0x8] sm:$0xf]
    %v350 = vld [vmem:[#allocation5 + $0xc] sm:$0xf]
    %v351 = vld [vmem:[#allocation5 + $0x10] sm:$0xf]
    %v352 = vld [vmem:[#allocation5 + $0x14] sm:$0xf]
    %v353 = vld [vmem:[#allocation5 + $0x18] sm:$0xf]
    %v354 = vld [vmem:[#allocation5 + $0x1c] sm:$0xf]
    %v355 = vld [vmem:[#allocation5 + $0x20] sm:$0xf]
    %v356 = vld [vmem:[#allocation5 + $0x24] sm:$0xf]
    %v357 = vld [vmem:[#allocation5 + $0x28] sm:$0xf]
    %v358 = vld [vmem:[#allocation5 + $0x2c] sm:$0xf]
    %v359 = vld [vmem:[#allocation5 + $0x30] sm:$0xf]
    %v360 = vld [vmem:[#allocation5 + $0x34] sm:$0xf]
    %v361 = vld [vmem:[#allocation5 + $0x38] sm:$0xf]
    %v362 = vld [vmem:[#allocation5 + $0x3c] sm:$0xf]
    %v379 = vunpack.c.l.b16 %v347
    %v380 = vunpack.c.l.b16 %v348
    %v381 = vunpack.c.l.b16 %v349
    %v382 = vunpack.c.l.b16 %v350
    %v383 = vunpack.c.l.b16 %v351
    %v384 = vunpack.c.l.b16 %v352
    %v385 = vunpack.c.l.b16 %v353
    %v386 = vunpack.c.l.b16 %v354
    %v387 = vunpack.c.l.b16 %v355
    %v388 = vunpack.c.l.b16 %v356
    %v389 = vunpack.c.l.b16 %v357
    %v390 = vunpack.c.l.b16 %v358
    %v391 = vunpack.c.l.b16 %v359
    %v392 = vunpack.c.l.b16 %v360
    %v393 = vunpack.c.l.b16 %v361
    %v394 = vunpack.c.l.b16 %v362
    %v395 = vpack.c.b16 %v380, %v379
    %v396 = vpack.c.b16 %v382, %v381
    %v397 = vpack.c.b16 %v384, %v383
    %v398 = vpack.c.b16 %v386, %v385
    %v399 = vpack.c.b16 %v388, %v387
    %v400 = vpack.c.b16 %v390, %v389
    %v401 = vpack.c.b16 %v392, %v391
    %v402 = vpack.c.b16 %v394, %v393
    %411 = vmatprep.subr.bf16.mxu0 0
    %412 = vmatpush1.bf16.msra.mxu0 %v395
    %413 = vmatprep.subr.bf16.mxu0 0
    %414 = vmatpush1.bf16.msra.mxu0 %v396
    %415 = vmatprep.subr.bf16.mxu0 0
    %416 = vmatpush1.bf16.msra.mxu0 %v397
    %417 = vmatprep.subr.bf16.mxu0 0
    %418 = vmatpush1.bf16.msra.mxu0 %v398
    %419 = vmatprep.subr.bf16.mxu0 0
    %420 = vmatpush1.bf16.msra.mxu0 %v399
    %421 = vmatprep.subr.bf16.mxu0 0
    %422 = vmatpush1.bf16.msra.mxu0 %v400
    %423 = vmatprep.subr.bf16.mxu0 0
    %424 = vmatpush1.bf16.msra.mxu0 %v401
    %425 = vmatprep.subr.bf16.mxu0 0
    %426 = vmatpush1.bf16.msra.mxu0 %v402
    %427 = vmatprep.subr.bf16.mxu0 0
    %428 = vmatpush1.bf16.msra.mxu0 0
    %429 = vmatprep.subr.bf16.mxu0 0
    %430 = vmatpush1.bf16.msra.mxu0 0
    %431 = vmatprep.subr.bf16.mxu0 0
    %432 = vmatpush1.bf16.msra.mxu0 0
    %433 = vmatprep.subr.bf16.mxu0 0
    %434 = vmatpush1.bf16.msra.mxu0 0
    %435 = vmatprep.subr.bf16.mxu0 0
    %436 = vmatpush1.bf16.msra.mxu0 0
    %437 = vmatprep.subr.bf16.mxu0 0
    %438 = vmatpush1.bf16.msra.mxu0 0
    %439 = vmatprep.subr.bf16.mxu0 0
    %440 = vmatpush1.bf16.msra.mxu0 0
    %441 = vmatprep.subr.bf16.mxu0 0
    %442 = vmatpush1.bf16.msra.mxu0 0
    %443 = vmatprep.mubr.bf16.mxu0 0
    %444 = vmatmul.mubr.bf16.gmra.mrb[0].mxu0 %v339
    %v445 = vpop.f32.mrb[0].mxu0
    %v446 = vadd.f32 0.0, %v445
    %v447 = vpop.f32.mrb[0].mxu0
    %v448 = vpop.f32.mrb[0].mxu0
    %v449 = vadd.f32 0.0, %v448
    %v450 = vpop.f32.mrb[0].mxu0
    %451 = vmatprep.mubr.bf16.mxu0 0
    %452 = vmatmul.mubr.bf16.gmra.mrb[0].mxu0 %v340
    %v453 = vpop.f32.mrb[0].mxu0
    %v454 = vadd.f32 0.0, %v453
    %v455 = vpop.f32.mrb[0].mxu0
    %v456 = vpop.f32.mrb[0].mxu0
    %v457 = vadd.f32 0.0, %v456
    %v458 = vpop.f32.mrb[0].mxu0
    %459 = vmatprep.mubr.bf16.mxu0 0
    %460 = vmatmul.mubr.bf16.gmra.mrb[0].mxu0 %v341
    %v461 = vpop.f32.mrb[0].mxu0
    %v462 = vadd.f32 0.0, %v461
    %v463 = vpop.f32.mrb[0].mxu0
    %v464 = vpop.f32.mrb[0].mxu0
    %v465 = vadd.f32 0.0, %v464
    %v466 = vpop.f32.mrb[0].mxu0
    %467 = vmatprep.mubr.bf16.mxu0 0
    %468 = vmatmul.mubr.bf16.gmra.mrb[0].mxu0 %v342
    %v469 = vpop.f32.mrb[0].mxu0
    %v470 = vadd.f32 0.0, %v469
    %v471 = vpop.f32.mrb[0].mxu0
    %v472 = vpop.f32.mrb[0].mxu0
    %v473 = vadd.f32 0.0, %v472
    %v474 = vpop.f32.mrb[0].mxu0
    %475 = vmatprep.mubr.bf16.mxu0 0
    %476 = vmatmul.mubr.bf16.gmra.mrb[0].mxu0 %v343
    %v477 = vpop.f32.mrb[0].mxu0
    %v478 = vadd.f32 0.0, %v477
    %v479 = vpop.f32.mrb[0].mxu0
    %v480 = vpop.f32.mrb[0].mxu0
    %v481 = vadd.f32 0.0, %v480
    %v482 = vpop.f32.mrb[0].mxu0
    %483 = vmatprep.mubr.bf16.mxu0 0
    %484 = vmatmul.mubr.bf16.gmra.mrb[0].mxu0 %v344
    %v485 = vpop.f32.mrb[0].mxu0
    %v486 = vadd.f32 0.0, %v485
    %v487 = vpop.f32.mrb[0].mxu0
    %v488 = vpop.f32.mrb[0].mxu0
    %v489 = vadd.f32 0.0, %v488
    %v490 = vpop.f32.mrb[0].mxu0
    %491 = vmatprep.mubr.bf16.mxu0 0
    %492 = vmatmul.mubr.bf16.gmra.mrb[0].mxu0 %v345
    %v493 = vpop.f32.mrb[0].mxu0
    %v494 = vadd.f32 0.0, %v493
    %v495 = vpop.f32.mrb[0].mxu0
    %v496 = vpop.f32.mrb[0].mxu0
    %v497 = vadd.f32 0.0, %v496
    %v498 = vpop.f32.mrb[0].mxu0
    %499 = vmatprep.mubr.bf16.mxu0 0
    %500 = vmatmul.mubr.bf16.gmra.mrb[0].mxu0 %v346
    %v501 = vpop.f32.mrb[0].mxu0
    %v502 = vadd.f32 0.0, %v501
    %v503 = vpop.f32.mrb[0].mxu0
    %v504 = vpop.f32.mrb[0].mxu0
    %v505 = vadd.f32 0.0, %v504
    %v506 = vpop.f32.mrb[0].mxu0
    %507 = vdwg.mxu0
    %v508 = vpack.c.bf16 %v449, %v446
    %v509 = vpack.c.bf16 %v457, %v454
    %v510 = vpack.c.bf16 %v465, %v462
    %v511 = vpack.c.bf16 %v473, %v470
    %v512 = vpack.c.bf16 %v481, %v478
    %v513 = vpack.c.bf16 %v489, %v486
    %v514 = vpack.c.bf16 %v497, %v494
    %v515 = vpack.c.bf16 %v505, %v502
    %v532 = vunpack.c.l.b16 %v307
    %v533 = vunpack.c.l.b16 %v308
    %v534 = vunpack.c.l.b16 %v309
    %v535 = vunpack.c.l.b16 %v310
    %v536 = vunpack.c.l.b16 %v311
    %v537 = vunpack.c.l.b16 %v312
    %v538 = vunpack.c.l.b16 %v313
    %v539 = vunpack.c.l.b16 %v314
    %v540 = vunpack.c.l.b16 %v315
    %v541 = vunpack.c.l.b16 %v316
    %v542 = vunpack.c.l.b16 %v317
    %v543 = vunpack.c.l.b16 %v318
    %v544 = vunpack.c.l.b16 %v319
    %v545 = vunpack.c.l.b16 %v320
    %v546 = vunpack.c.l.b16 %v321
    %v547 = vunpack.c.l.b16 %v322
    %v548 = vpack.c.b16 %v533, %v532
    %v549 = vpack.c.b16 %v535, %v534
    %v550 = vpack.c.b16 %v537, %v536
    %v551 = vpack.c.b16 %v539, %v538
    %v552 = vpack.c.b16 %v541, %v540
    %v553 = vpack.c.b16 %v543, %v542
    %v554 = vpack.c.b16 %v545, %v544
    %v555 = vpack.c.b16 %v547, %v546
    %564 = vmatprep.subr.bf16.mxu0 0
    %565 = vmatpush1.bf16.msra.mxu0 %v508
    %566 = vmatprep.subr.bf16.mxu0 0
    %567 = vmatpush1.bf16.msra.mxu0 %v509
    %568 = vmatprep.subr.bf16.mxu0 0
    %569 = vmatpush1.bf16.msra.mxu0 %v510
    %570 = vmatprep.subr.bf16.mxu0 0
    %571 = vmatpush1.bf16.msra.mxu0 %v511
    %572 = vmatprep.subr.bf16.mxu0 0
    %573 = vmatpush1.bf16.msra.mxu0 %v512
    %574 = vmatprep.subr.bf16.mxu0 0
    %575 = vmatpush1.bf16.msra.mxu0 %v513
    %576 = vmatprep.subr.bf16.mxu0 0
    %577 = vmatpush1.bf16.msra.mxu0 %v514
    %578 = vmatprep.subr.bf16.mxu0 0
    %579 = vmatpush1.bf16.msra.mxu0 %v515
    %580 = vmatprep.subr.bf16.mxu0 0
    %581 = vmatpush1.bf16.msra.mxu0 0
    %582 = vmatprep.subr.bf16.mxu0 0
    %583 = vmatpush1.bf16.msra.mxu0 0
    %584 = vmatprep.subr.bf16.mxu0 0
    %585 = vmatpush1.bf16.msra.mxu0 0
    %586 = vmatprep.subr.bf16.mxu0 0
    %587 = vmatpush1.bf16.msra.mxu0 0
    %588 = vmatprep.subr.bf16.mxu0 0
    %589 = vmatpush1.bf16.msra.mxu0 0
    %590 = vmatprep.subr.bf16.mxu0 0
    %591 = vmatpush1.bf16.msra.mxu0 0
    %592 = vmatprep.subr.bf16.mxu0 0
    %593 = vmatpush1.bf16.msra.mxu0 0
    %594 = vmatprep.subr.bf16.mxu0 0
    %595 = vmatpush1.bf16.msra.mxu0 0
    %596 = vmatprep.mubr.bf16.mxu0 0
    %597 = vmatmul.mubr.bf16.gmra.mrb[0].mxu0 %v548
    %v598 = vpop.f32.mrb[0].mxu0
    %v599 = vadd.f32 0.0, %v598
    %v600 = vpop.f32.mrb[0].mxu0
    %v601 = vpop.f32.mrb[0].mxu0
    %v602 = vadd.f32 0.0, %v601
    %v603 = vpop.f32.mrb[0].mxu0
    %604 = vmatprep.mubr.bf16.mxu0 0
    %605 = vmatmul.mubr.bf16.gmra.mrb[0].mxu0 %v549
    %v606 = vpop.f32.mrb[0].mxu0
    %v607 = vadd.f32 0.0, %v606
    %v608 = vpop.f32.mrb[0].mxu0
    %v609 = vpop.f32.mrb[0].mxu0
    %v610 = vadd.f32 0.0, %v609
    %v611 = vpop.f32.mrb[0].mxu0
    %612 = vmatprep.mubr.bf16.mxu0 0
    %613 = vmatmul.mubr.bf16.gmra.mrb[0].mxu0 %v550
    %v614 = vpop.f32.mrb[0].mxu0
    %v615 = vadd.f32 0.0, %v614
    %v616 = vpop.f32.mrb[0].mxu0
    %v617 = vpop.f32.mrb[0].mxu0
    %v618 = vadd.f32 0.0, %v617
    %v619 = vpop.f32.mrb[0].mxu0
    %620 = vmatprep.mubr.bf16.mxu0 0
    %621 = vmatmul.mubr.bf16.gmra.mrb[0].mxu0 %v551
    %v622 = vpop.f32.mrb[0].mxu0
    %v623 = vadd.f32 0.0, %v622
    %v624 = vpop.f32.mrb[0].mxu0
    %v625 = vpop.f32.mrb[0].mxu0
    %v626 = vadd.f32 0.0, %v625
    %v627 = vpop.f32.mrb[0].mxu0
    %628 = vmatprep.mubr.bf16.mxu0 0
    %629 = vmatmul.mubr.bf16.gmra.mrb[0].mxu0 %v552
    %v630 = vpop.f32.mrb[0].mxu0
    %v631 = vadd.f32 0.0, %v630
    %v632 = vpop.f32.mrb[0].mxu0
    %v633 = vpop.f32.mrb[0].mxu0
    %v634 = vadd.f32 0.0, %v633
    %v635 = vpop.f32.mrb[0].mxu0
    %636 = vmatprep.mubr.bf16.mxu0 0
    %637 = vmatmul.mubr.bf16.gmra.mrb[0].mxu0 %v553
    %v638 = vpop.f32.mrb[0].mxu0
    %v639 = vadd.f32 0.0, %v638
    %v640 = vpop.f32.mrb[0].mxu0
    %v641 = vpop.f32.mrb[0].mxu0
    %v642 = vadd.f32 0.0, %v641
    %v643 = vpop.f32.mrb[0].mxu0
    %644 = vmatprep.mubr.bf16.mxu0 0
    %645 = vmatmul.mubr.bf16.gmra.mrb[0].mxu0 %v554
    %v646 = vpop.f32.mrb[0].mxu0
    %v647 = vadd.f32 0.0, %v646
    %v648 = vpop.f32.mrb[0].mxu0
    %v649 = vpop.f32.mrb[0].mxu0
    %v650 = vadd.f32 0.0, %v649
    %v651 = vpop.f32.mrb[0].mxu0
    %652 = vmatprep.mubr.bf16.mxu0 0
    %653 = vmatmul.mubr.bf16.gmra.mrb[0].mxu0 %v555
    %v654 = vpop.f32.mrb[0].mxu0
    %v655 = vadd.f32 0.0, %v654
    %v656 = vpop.f32.mrb[0].mxu0
    %v657 = vpop.f32.mrb[0].mxu0
    %v658 = vadd.f32 0.0, %v657
    %v659 = vpop.f32.mrb[0].mxu0
    %660 = vdwg.mxu0
    %662 = vset.pattern.permute.xlu0 0
    %663 = vperm.xlu0 %662, %v323
    %v664 = vpop.permute.xlu0 %663
    %667 = vset.pattern.permute.xlu0 0
    %668 = vperm.xlu0 %667, %v324
    %v669 = vpop.permute.xlu0 %668
    %672 = vset.pattern.permute.xlu0 0
    %673 = vperm.xlu0 %672, %v325
    %v674 = vpop.permute.xlu0 %673
    %677 = vset.pattern.permute.xlu0 0
    %678 = vperm.xlu0 %677, %v326
    %v679 = vpop.permute.xlu0 %678
    %682 = vset.pattern.permute.xlu0 0
    %683 = vperm.xlu0 %682, %v327
    %v684 = vpop.permute.xlu0 %683
    %687 = vset.pattern.permute.xlu0 0
    %688 = vperm.xlu0 %687, %v328
    %v689 = vpop.permute.xlu0 %688
    %692 = vset.pattern.permute.xlu0 0
    %693 = vperm.xlu0 %692, %v329
    %v694 = vpop.permute.xlu0 %693
    %697 = vset.pattern.permute.xlu0 0
    %698 = vperm.xlu0 %697, %v330
    %v699 = vpop.permute.xlu0 %698
    %702 = vset.pattern.permute.xlu0 0
    %703 = vperm.xlu0 %702, %v331
    %v704 = vpop.permute.xlu0 %703
    %707 = vset.pattern.permute.xlu0 0
    %708 = vperm.xlu0 %707, %v332
    %v709 = vpop.permute.xlu0 %708
    %712 = vset.pattern.permute.xlu0 0
    %713 = vperm.xlu0 %712, %v333
    %v714 = vpop.permute.xlu0 %713
    %717 = vset.pattern.permute.xlu0 0
    %718 = vperm.xlu0 %717, %v334
    %v719 = vpop.permute.xlu0 %718
    %722 = vset.pattern.permute.xlu0 0
    %723 = vperm.xlu0 %722, %v335
    %v724 = vpop.permute.xlu0 %723
    %727 = vset.pattern.permute.xlu0 0
    %728 = vperm.xlu0 %727, %v336
    %v729 = vpop.permute.xlu0 %728
    %732 = vset.pattern.permute.xlu0 0
    %733 = vperm.xlu0 %732, %v337
    %v734 = vpop.permute.xlu0 %733
    %737 = vset.pattern.permute.xlu0 0
    %738 = vperm.xlu0 %737, %v338
    %v739 = vpop.permute.xlu0 %738
    %v741 = vmul.f32 %v599, %v664
    %v742 = vmul.f32 %v602, %v669
    %v743 = vmul.f32 %v607, %v674
    %v744 = vmul.f32 %v610, %v679
    %v745 = vmul.f32 %v615, %v684
    %v746 = vmul.f32 %v618, %v689
    %v747 = vmul.f32 %v623, %v694
    %v748 = vmul.f32 %v626, %v699
    %v749 = vmul.f32 %v631, %v704
    %v750 = vmul.f32 %v634, %v709
    %v751 = vmul.f32 %v639, %v714
    %v752 = vmul.f32 %v642, %v719
    %v753 = vmul.f32 %v647, %v724
    %v754 = vmul.f32 %v650, %v729
    %v755 = vmul.f32 %v655, %v734
    %v756 = vmul.f32 %v658, %v739
    %v757 = vmax.f32 %v741, 0.0
    %v758 = vmax.f32 %v742, 0.0
    %v759 = vmax.f32 %v743, 0.0
    %v760 = vmax.f32 %v744, 0.0
    %v761 = vmax.f32 %v745, 0.0
    %v762 = vmax.f32 %v746, 0.0
    %v763 = vmax.f32 %v747, 0.0
    %v764 = vmax.f32 %v748, 0.0
    %v765 = vmax.f32 %v749, 0.0
    %v766 = vmax.f32 %v750, 0.0
    %v767 = vmax.f32 %v751, 0.0
    %v768 = vmax.f32 %v752, 0.0
    %v769 = vmax.f32 %v753, 0.0
    %v770 = vmax.f32 %v754, 0.0
    %v771 = vmax.f32 %v755, 0.0
    %v772 = vmax.f32 %v756, 0.0
    %v773 = vpack.c.bf16 %v758, %v757
    %v774 = vpack.c.bf16 %v760, %v759
    %v775 = vpack.c.bf16 %v762, %v761
    %v776 = vpack.c.bf16 %v764, %v763
    %v777 = vpack.c.bf16 %v766, %v765
    %v778 = vpack.c.bf16 %v768, %v767
    %v779 = vpack.c.bf16 %v770, %v769
    %v780 = vpack.c.bf16 %v772, %v771
    %v781 = vld [vmem:[#allocation7] sm:$0xf]
    %v782 = vld [vmem:[#allocation7 + $0x4] sm:$0xf]
    %v783 = vld [vmem:[#allocation7 + $0x8] sm:$0xf]
    %v784 = vld [vmem:[#allocation7 + $0xc] sm:$0xf]
    %v785 = vld [vmem:[#allocation7 + $0x10] sm:$0xf]
    %v786 = vld [vmem:[#allocation7 + $0x14] sm:$0xf]
    %v787 = vld [vmem:[#allocation7 + $0x18] sm:$0xf]
    %v788 = vld [vmem:[#allocation7 + $0x1c] sm:$0xf]
    %v789 = vld [vmem:[#allocation7 + $0x20] sm:$0xf]
    %v790 = vld [vmem:[#allocation7 + $0x24] sm:$0xf]
    %v791 = vld [vmem:[#allocation7 + $0x28] sm:$0xf]
    %v792 = vld [vmem:[#allocation7 + $0x2c] sm:$0xf]
    %v793 = vld [vmem:[#allocation7 + $0x30] sm:$0xf]
    %v794 = vld [vmem:[#allocation7 + $0x34] sm:$0xf]
    %v795 = vld [vmem:[#allocation7 + $0x38] sm:$0xf]
    %v796 = vld [vmem:[#allocation7 + $0x3c] sm:$0xf]
    %v813 = vunpack.c.l.b16 %v781
    %v814 = vunpack.c.l.b16 %v782
    %v815 = vunpack.c.l.b16 %v783
    %v816 = vunpack.c.l.b16 %v784
    %v817 = vunpack.c.l.b16 %v785
    %v818 = vunpack.c.l.b16 %v786
    %v819 = vunpack.c.l.b16 %v787
    %v820 = vunpack.c.l.b16 %v788
    %v821 = vunpack.c.l.b16 %v789
    %v822 = vunpack.c.l.b16 %v790
    %v823 = vunpack.c.l.b16 %v791
    %v824 = vunpack.c.l.b16 %v792
    %v825 = vunpack.c.l.b16 %v793
    %v826 = vunpack.c.l.b16 %v794
    %v827 = vunpack.c.l.b16 %v795
    %v828 = vunpack.c.l.b16 %v796
    %v829 = vpack.c.b16 %v814, %v813
    %v830 = vpack.c.b16 %v816, %v815
    %v831 = vpack.c.b16 %v818, %v817
    %v832 = vpack.c.b16 %v820, %v819
    %v833 = vpack.c.b16 %v822, %v821
    %v834 = vpack.c.b16 %v824, %v823
    %v835 = vpack.c.b16 %v826, %v825
    %v836 = vpack.c.b16 %v828, %v827
    %845 = vmatprep.subr.bf16.mxu0 0
    %846 = vmatpush1.bf16.msra.mxu0 %v829
    %847 = vmatprep.subr.bf16.mxu0 0
    %848 = vmatpush1.bf16.msra.mxu0 %v830
    %849 = vmatprep.subr.bf16.mxu0 0
    %850 = vmatpush1.bf16.msra.mxu0 %v831
    %851 = vmatprep.subr.bf16.mxu0 0
    %852 = vmatpush1.bf16.msra.mxu0 %v832
    %853 = vmatprep.subr.bf16.mxu0 0
    %854 = vmatpush1.bf16.msra.mxu0 %v833
    %855 = vmatprep.subr.bf16.mxu0 0
    %856 = vmatpush1.bf16.msra.mxu0 %v834
    %857 = vmatprep.subr.bf16.mxu0 0
    %858 = vmatpush1.bf16.msra.mxu0 %v835
    %859 = vmatprep.subr.bf16.mxu0 0
    %860 = vmatpush1.bf16.msra.mxu0 %v836
    %861 = vmatprep.subr.bf16.mxu0 0
    %862 = vmatpush1.bf16.msra.mxu0 0
    %863 = vmatprep.subr.bf16.mxu0 0
    %864 = vmatpush1.bf16.msra.mxu0 0
    %865 = vmatprep.subr.bf16.mxu0 0
    %866 = vmatpush1.bf16.msra.mxu0 0
    %867 = vmatprep.subr.bf16.mxu0 0
    %868 = vmatpush1.bf16.msra.mxu0 0
    %869 = vmatprep.subr.bf16.mxu0 0
    %870 = vmatpush1.bf16.msra.mxu0 0
    %871 = vmatprep.subr.bf16.mxu0 0
    %872 = vmatpush1.bf16.msra.mxu0 0
    %873 = vmatprep.subr.bf16.mxu0 0
    %874 = vmatpush1.bf16.msra.mxu0 0
    %875 = vmatprep.subr.bf16.mxu0 0
    %876 = vmatpush1.bf16.msra.mxu0 0
    %877 = vmatprep.mubr.bf16.mxu0 0
    %878 = vmatmul.mubr.bf16.gmra.mrb[0].mxu0 %v773
    %v879 = vpop.f32.mrb[0].mxu0
    %v880 = vadd.f32 0.0, %v879
    %v881 = vpop.f32.mrb[0].mxu0
    %v882 = vpop.f32.mrb[0].mxu0
    %v883 = vadd.f32 0.0, %v882
    %v884 = vpop.f32.mrb[0].mxu0
    %885 = vmatprep.mubr.bf16.mxu0 0
    %886 = vmatmul.mubr.bf16.gmra.mrb[0].mxu0 %v774
    %v887 = vpop.f32.mrb[0].mxu0
    %v888 = vadd.f32 0.0, %v887
    %v889 = vpop.f32.mrb[0].mxu0
    %v890 = vpop.f32.mrb[0].mxu0
    %v891 = vadd.f32 0.0, %v890
    %v892 = vpop.f32.mrb[0].mxu0
    %893 = vmatprep.mubr.bf16.mxu0 0
    %894 = vmatmul.mubr.bf16.gmra.mrb[0].mxu0 %v775
    %v895 = vpop.f32.mrb[0].mxu0
    %v896 = vadd.f32 0.0, %v895
    %v897 = vpop.f32.mrb[0].mxu0
    %v898 = vpop.f32.mrb[0].mxu0
    %v899 = vadd.f32 0.0, %v898
    %v900 = vpop.f32.mrb[0].mxu0
    %901 = vmatprep.mubr.bf16.mxu0 0
    %902 = vmatmul.mubr.bf16.gmra.mrb[0].mxu0 %v776
    %v903 = vpop.f32.mrb[0].mxu0
    %v904 = vadd.f32 0.0, %v903
    %v905 = vpop.f32.mrb[0].mxu0
    %v906 = vpop.f32.mrb[0].mxu0
    %v907 = vadd.f32 0.0, %v906
    %v908 = vpop.f32.mrb[0].mxu0
    %909 = vmatprep.mubr.bf16.mxu0 0
    %910 = vmatmul.mubr.bf16.gmra.mrb[0].mxu0 %v777
    %v911 = vpop.f32.mrb[0].mxu0
    %v912 = vadd.f32 0.0, %v911
    %v913 = vpop.f32.mrb[0].mxu0
    %v914 = vpop.f32.mrb[0].mxu0
    %v915 = vadd.f32 0.0, %v914
    %v916 = vpop.f32.mrb[0].mxu0
    %917 = vmatprep.mubr.bf16.mxu0 0
    %918 = vmatmul.mubr.bf16.gmra.mrb[0].mxu0 %v778
    %v919 = vpop.f32.mrb[0].mxu0
    %v920 = vadd.f32 0.0, %v919
    %v921 = vpop.f32.mrb[0].mxu0
    %v922 = vpop.f32.mrb[0].mxu0
    %v923 = vadd.f32 0.0, %v922
    %v924 = vpop.f32.mrb[0].mxu0
    %925 = vmatprep.mubr.bf16.mxu0 0
    %926 = vmatmul.mubr.bf16.gmra.mrb[0].mxu0 %v779
    %v927 = vpop.f32.mrb[0].mxu0
    %v928 = vadd.f32 0.0, %v927
    %v929 = vpop.f32.mrb[0].mxu0
    %v930 = vpop.f32.mrb[0].mxu0
    %v931 = vadd.f32 0.0, %v930
    %v932 = vpop.f32.mrb[0].mxu0
    %933 = vmatprep.mubr.bf16.mxu0 0
    %934 = vmatmul.mubr.bf16.gmra.mrb[0].mxu0 %v780
    %v935 = vpop.f32.mrb[0].mxu0
    %v936 = vadd.f32 0.0, %v935
    %v937 = vpop.f32.mrb[0].mxu0
    %v938 = vpop.f32.mrb[0].mxu0
    %v939 = vadd.f32 0.0, %v938
    %v940 = vpop.f32.mrb[0].mxu0
    %941 = vdwg.mxu0
    %v942 = vpack.c.bf16 %v883, %v880
    %v943 = vpack.c.bf16 %v891, %v888
    %v944 = vpack.c.bf16 %v899, %v896
    %v945 = vpack.c.bf16 %v907, %v904
    %v946 = vpack.c.bf16 %v915, %v912
    %v947 = vpack.c.bf16 %v923, %v920
    %v948 = vpack.c.bf16 %v931, %v928
    %v949 = vpack.c.bf16 %v939, %v936
    %950 = vmatprep.subr.bf16.mxu0 0
    %951 = vmatpush1.bf16.msra.mxu0 %v942
    %952 = vmatprep.subr.bf16.mxu0 0
    %953 = vmatpush1.bf16.msra.mxu0 %v943
    %954 = vmatprep.subr.bf16.mxu0 0
    %955 = vmatpush1.bf16.msra.mxu0 %v944
    %956 = vmatprep.subr.bf16.mxu0 0
    %957 = vmatpush1.bf16.msra.mxu0 %v945
    %958 = vmatprep.subr.bf16.mxu0 0
    %959 = vmatpush1.bf16.msra.mxu0 %v946
    %960 = vmatprep.subr.bf16.mxu0 0
    %961 = vmatpush1.bf16.msra.mxu0 %v947
    %962 = vmatprep.subr.bf16.mxu0 0
    %963 = vmatpush1.bf16.msra.mxu0 %v948
    %964 = vmatprep.subr.bf16.mxu0 0
    %965 = vmatpush1.bf16.msra.mxu0 %v949
    %966 = vmatprep.subr.bf16.mxu0 0
    %967 = vmatpush1.bf16.msra.mxu0 0
    %968 = vmatprep.subr.bf16.mxu0 0
    %969 = vmatpush1.bf16.msra.mxu0 0
    %970 = vmatprep.subr.bf16.mxu0 0
    %971 = vmatpush1.bf16.msra.mxu0 0
    %972 = vmatprep.subr.bf16.mxu0 0
    %973 = vmatpush1.bf16.msra.mxu0 0
    %974 = vmatprep.subr.bf16.mxu0 0
    %975 = vmatpush1.bf16.msra.mxu0 0
    %976 = vmatprep.subr.bf16.mxu0 0
    %977 = vmatpush1.bf16.msra.mxu0 0
    %978 = vmatprep.subr.bf16.mxu0 0
    %979 = vmatpush1.bf16.msra.mxu0 0
    %980 = vmatprep.subr.bf16.mxu0 0
    %981 = vmatpush1.bf16.msra.mxu0 0
    %982 = vmatprep.mubr.bf16.mxu0 0
    %983 = vmatmul.mubr.bf16.gmra.mrb[0].mxu0 %v548
    %v984 = vpop.f32.mrb[0].mxu0
    %v985 = vadd.f32 0.0, %v984
    %v986 = vpop.f32.mrb[0].mxu0
    %v987 = vpop.f32.mrb[0].mxu0
    %v988 = vadd.f32 0.0, %v987
    %v989 = vpop.f32.mrb[0].mxu0
    %990 = vmatprep.mubr.bf16.mxu0 0
    %991 = vmatmul.mubr.bf16.gmra.mrb[0].mxu0 %v549
    %v992 = vpop.f32.mrb[0].mxu0
    %v993 = vadd.f32 0.0, %v992
    %v994 = vpop.f32.mrb[0].mxu0
    %v995 = vpop.f32.mrb[0].mxu0
    %v996 = vadd.f32 0.0, %v995
    %v997 = vpop.f32.mrb[0].mxu0
    %998 = vmatprep.mubr.bf16.mxu0 0
    %999 = vmatmul.mubr.bf16.gmra.mrb[0].mxu0 %v550
    %v1000 = vpop.f32.mrb[0].mxu0
    %v1001 = vadd.f32 0.0, %v1000
    %v1002 = vpop.f32.mrb[0].mxu0
    %v1003 = vpop.f32.mrb[0].mxu0
    %v1004 = vadd.f32 0.0, %v1003
    %v1005 = vpop.f32.mrb[0].mxu0
    %1006 = vmatprep.mubr.bf16.mxu0 0
    %1007 = vmatmul.mubr.bf16.gmra.mrb[0].mxu0 %v551
    %v1008 = vpop.f32.mrb[0].mxu0
    %v1009 = vadd.f32 0.0, %v1008
    %v1010 = vpop.f32.mrb[0].mxu0
    %v1011 = vpop.f32.mrb[0].mxu0
    %v1012 = vadd.f32 0.0, %v1011
    %v1013 = vpop.f32.mrb[0].mxu0
    %1014 = vmatprep.mubr.bf16.mxu0 0
    %1015 = vmatmul.mubr.bf16.gmra.mrb[0].mxu0 %v552
    %v1016 = vpop.f32.mrb[0].mxu0
    %v1017 = vadd.f32 0.0, %v1016
    %v1018 = vpop.f32.mrb[0].mxu0
    %v1019 = vpop.f32.mrb[0].mxu0
    %v1020 = vadd.f32 0.0, %v1019
    %v1021 = vpop.f32.mrb[0].mxu0
    %1022 = vmatprep.mubr.bf16.mxu0 0
    %1023 = vmatmul.mubr.bf16.gmra.mrb[0].mxu0 %v553
    %v1024 = vpop.f32.mrb[0].mxu0
    %v1025 = vadd.f32 0.0, %v1024
    %v1026 = vpop.f32.mrb[0].mxu0
    %v1027 = vpop.f32.mrb[0].mxu0
    %v1028 = vadd.f32 0.0, %v1027
    %v1029 = vpop.f32.mrb[0].mxu0
    %1030 = vmatprep.mubr.bf16.mxu0 0
    %1031 = vmatmul.mubr.bf16.gmra.mrb[0].mxu0 %v554
    %v1032 = vpop.f32.mrb[0].mxu0
    %v1033 = vadd.f32 0.0, %v1032
    %v1034 = vpop.f32.mrb[0].mxu0
    %v1035 = vpop.f32.mrb[0].mxu0
    %v1036 = vadd.f32 0.0, %v1035
    %v1037 = vpop.f32.mrb[0].mxu0
    %1038 = vmatprep.mubr.bf16.mxu0 0
    %1039 = vmatmul.mubr.bf16.gmra.mrb[0].mxu0 %v555
    %v1040 = vpop.f32.mrb[0].mxu0
    %v1041 = vadd.f32 0.0, %v1040
    %v1042 = vpop.f32.mrb[0].mxu0
    %v1043 = vpop.f32.mrb[0].mxu0
    %v1044 = vadd.f32 0.0, %v1043
    %v1045 = vpop.f32.mrb[0].mxu0
    %1046 = vdwg.mxu0
    %v1047 = vmul.f32 %v985, %v664
    %v1048 = vmul.f32 %v988, %v669
    %v1049 = vmul.f32 %v993, %v674
    %v1050 = vmul.f32 %v996, %v679
    %v1051 = vmul.f32 %v1001, %v684
    %v1052 = vmul.f32 %v1004, %v689
    %v1053 = vmul.f32 %v1009, %v694
    %v1054 = vmul.f32 %v1012, %v699
    %v1055 = vmul.f32 %v1017, %v704
    %v1056 = vmul.f32 %v1020, %v709
    %v1057 = vmul.f32 %v1025, %v714
    %v1058 = vmul.f32 %v1028, %v719
    %v1059 = vmul.f32 %v1033, %v724
    %v1060 = vmul.f32 %v1036, %v729
    %v1061 = vmul.f32 %v1041, %v734
    %v1062 = vmul.f32 %v1044, %v739
    %v1063 = vmax.f32 %v1047, 0.0
    %v1064 = vmax.f32 %v1048, 0.0
    %v1065 = vmax.f32 %v1049, 0.0
    %v1066 = vmax.f32 %v1050, 0.0
    %v1067 = vmax.f32 %v1051, 0.0
    %v1068 = vmax.f32 %v1052, 0.0
    %v1069 = vmax.f32 %v1053, 0.0
    %v1070 = vmax.f32 %v1054, 0.0
    %v1071 = vmax.f32 %v1055, 0.0
    %v1072 = vmax.f32 %v1056, 0.0
    %v1073 = vmax.f32 %v1057, 0.0
    %v1074 = vmax.f32 %v1058, 0.0
    %v1075 = vmax.f32 %v1059, 0.0
    %v1076 = vmax.f32 %v1060, 0.0
    %v1077 = vmax.f32 %v1061, 0.0
    %v1078 = vmax.f32 %v1062, 0.0
    %1079 = vst [vmem:[#allocation8] sm:$0xff] %v1063
    %1080 = vst [vmem:[#allocation8 + $0x8] sm:$0xff] %v1064
    %1081 = vst [vmem:[#allocation8 + $0x10] sm:$0xff] %v1065
    %1082 = vst [vmem:[#allocation8 + $0x18] sm:$0xff] %v1066
    %1083 = vst [vmem:[#allocation8 + $0x20] sm:$0xff] %v1067
    %1084 = vst [vmem:[#allocation8 + $0x28] sm:$0xff] %v1068
    %1085 = vst [vmem:[#allocation8 + $0x30] sm:$0xff] %v1069
    %1086 = vst [vmem:[#allocation8 + $0x38] sm:$0xff] %v1070
    %1087 = vst [vmem:[#allocation8 + $0x40] sm:$0xff] %v1071
    %1088 = vst [vmem:[#allocation8 + $0x48] sm:$0xff] %v1072
    %1089 = vst [vmem:[#allocation8 + $0x50] sm:$0xff] %v1073
    %1090 = vst [vmem:[#allocation8 + $0x58] sm:$0xff] %v1074
    %1091 = vst [vmem:[#allocation8 + $0x60] sm:$0xff] %v1075
    %1092 = vst [vmem:[#allocation8 + $0x68] sm:$0xff] %v1076
    %1093 = vst [vmem:[#allocation8 + $0x70] sm:$0xff] %v1077
    %1094 = vst [vmem:[#allocation8 + $0x78] sm:$0xff] %v1078
    // Predicated region
    $region38: #{tpu_custom_call.1} parent=1 // pred_check
      _
    $region39: #{tpu_custom_call.1} parent=1 // pred_check_branch
      %1096 = sbr.rel (0) target = $region41
    $region40: #{tpu_custom_call.1} parent=1 // pred_region
      %s1098 = ssub.s32 2048, 2048
      %1099 = vsyncadd [#allocation4], %s1098
      %s1100 = sshll.u32 [#allocation8], 4
      %s1101 = int_to_ptr.vmem [resolvable:$true] %s1100
      %1106 = dma.vmem_to_hbm [thread:$0]  %s1101, 2048, %s6, [#allocation4], 128, 128, 8
    $region41: #{tpu_custom_call.1} parent=1 // pred_fallthru
      _
    // Predicated region
    $region42: #{tpu_custom_call.1} parent=1 // pred_check
      _
    $region43: #{tpu_custom_call.1} parent=1 // pred_check_branch
      %1108 = sbr.rel (0) target = $region45
    $region44: #{tpu_custom_call.1} parent=1 // pred_region
      %1109 = dma.done [#allocation4], 2048
    $region45: #{tpu_custom_call.1} parent=1 // pred_fallthru
      _
    %1110 = vsyncpa [#allocation3], 1
    %1111 = vsyncpa [#allocation6], 1
    %1112 = vsyncpa [#allocation4], 1

</llo_original>
